<compile_context>
chip_gen: v7x
topology: tpu7x:2x2x1
jax: 0.10.0
libtpu: 0.0.40
codegen_flags: <defaults>
</compile_context>

<pallas_src>
import jax
import jax.numpy as jnp
from jax import lax
from jax.experimental import pallas as pl
from jax.experimental.pallas import tpu as pltpu


def _round_up(x, m):
    return ((x + m - 1) // m) * m


def _vmem_capacity_bytes() -> int:
    """Generation-aware VMEM capacity (128 MiB v5e/v6e, 64 MiB v7x)."""
    try:
        cap = int(pltpu.get_tpu_info().vmem_capacity_bytes)
        if cap > 0:
            return cap
    except Exception:
        pass
    try:
        kind = jax.devices()[0].device_kind.lower()
        if "v7" in kind:
            return 64 << 20
        return 128 << 20
    except Exception:
        return 64 << 20  # conservative (v7x physical)


def _choose_col_tile(pcols, W, V, x_itemsize, out_itemsize, a_bytes,
                     col_tile, nbuf_x):
    """Pick the column tile: big enough to amortize per-step overhead, small
    enough for the (double/triple-buffered) working set to fit VMEM, and
    balanced so the grid has >= 2 (ideally even) steps for v7x megacore."""
    cap = _vmem_capacity_bytes()
    budget = min(cap // 2, 96 << 20)              # ~32 MiB v7x, ~64 MiB v5e/v6e
    per_col = nbuf_x * W * x_itemsize + 2 * V * out_itemsize
    avail = budget - 2 * a_bytes - (2 << 20)      # resident A + headroom
    tn_vmem_max = max(128, (avail // max(per_col, 1)) // 128 * 128)

    # >= ~1 MiB of x per tile (long DMA runs, amortize ~0.35us/step overhead).
    tn_from_bytes = -(-(1 << 20) // max(W * x_itemsize, 1))
    tn_target = max(int(col_tile), tn_from_bytes)
    tn_target = max(128, min(_round_up(tn_target, 128), tn_vmem_max, pcols))

    ntiles = -(-pcols // tn_target)
    if pcols >= 256:
        ntiles = max(ntiles, 2)       # let both v7x TensorCores work
        if ntiles % 2:
            ntiles += 1               # prefer an even split
    tn = _round_up(-(-pcols // ntiles), 128)
    tn = max(128, min(tn, tn_vmem_max, pcols))
    return tn


def _nconv_matmul_kernel(a_ref, x_ref, o_ref):
    # a_ref: (V, W) adjacency, resident across all grid steps
    # x_ref: (W, tn) column tile of reorganized input
    # o_ref: (V, tn) column tile of output (lane-dense, unmasked store)
    o_ref[...] = jnp.dot(
        a_ref[...], x_ref[...], preferred_element_type=jnp.float32
    ).astype(o_ref.dtype)


def nconv(x, A, *, col_tile=8192, x_buffers=2):
    """x: (N, C, W, L), A: (V, W) -> (N, C, V, L); matches torch.einsum('ncwl,vw->ncvl')."""
    N, C, W, L = x.shape
    V, W2 = A.shape
    assert W == W2, f"adjacency second dim {W2} must match x's w dim {W}"

    out_dtype = jnp.promote_types(x.dtype, A.dtype)   # keep A precision (torch promotion)
    a_in = A.astype(out_dtype)
    x_itemsize = jnp.dtype(x.dtype).itemsize
    out_itemsize = jnp.dtype(out_dtype).itemsize
    a_bytes = V * W * out_itemsize

    # ---- wrapper-side reorg: one relayout pass, column = (n*C + c)*L + l ----
    ncols = N * C * L
    x2d = jnp.transpose(x, (2, 0, 1, 3)).reshape(W, ncols)

    # Pad columns only to a lane multiple (<=127 cols, fuses with the transpose).
    pcols = _round_up(ncols, 128)
    if pcols != ncols:
        x2d = jnp.pad(x2d, ((0, 0), (0, pcols - ncols)))

    nbuf_x = max(2, int(x_buffers))
    tn = _choose_col_tile(pcols, W, V, x_itemsize, out_itemsize, a_bytes,
                          col_tile, nbuf_x)
    grid_cols = pl.cdiv(pcols, tn)

    # Precise VMEM budget: buffered x/out tiles + resident A + ~4 MiB headroom.
    working_set = (nbuf_x * W * tn * x_itemsize
                   + 2 * V * tn * out_itemsize
                   + 2 * a_bytes)
    cap = _vmem_capacity_bytes()
    vmem_limit = int(min(max(working_set + (4 << 20), 16 << 20), cap * 3 // 4))

    cost = pl.CostEstimate(
        flops=2 * V * W * ncols,
        transcendentals=0,
        bytes_accessed=W * ncols * x_itemsize + V * ncols * out_itemsize + a_bytes,
    )

    # Optional triple buffering of the x tile (useful on v5e when latency-bound).
    if nbuf_x > 2:
        x_spec = pl.BlockSpec((W, tn), lambda j: (0, j),
                              pipeline_mode=pl.Buffered(nbuf_x))
    else:
        x_spec = pl.BlockSpec((W, tn), lambda j: (0, j))

    out2d = pl.pallas_call(
        _nconv_matmul_kernel,
        out_shape=jax.ShapeDtypeStruct((V, pcols), out_dtype),
        grid=(grid_cols,),
        in_specs=[
            pl.BlockSpec((V, W), lambda j: (0, 0)),   # A resident in VMEM
            x_spec,                                   # x column tile
        ],
        out_specs=pl.BlockSpec((V, tn), lambda j: (0, j)),
        compiler_params=pltpu.CompilerParams(
            dimension_semantics=("parallel",),
            vmem_limit_bytes=vmem_limit,
        ),
        cost_estimate=cost,
    )(a_in, x2d)

    # Drop column padding (if any) and restore (N, C, V, L).
    out = out2d[:, :ncols].reshape(V, N, C, L)
    return jnp.transpose(out, (1, 2, 0, 3))


def _check(name, x, A):
    out = jax.block_until_ready(nconv(x, A))
    ref = jnp.einsum("ncwl,vw->ncvl", x, A, precision=lax.Precision.HIGHEST)
    assert out.shape == ref.shape, (name, out.shape, ref.shape)
    assert jnp.allclose(out, ref, atol=1e-4, rtol=1e-4), f"{name}: mismatch vs einsum"


if __name__ == "__main__":
    key = jax.random.PRNGKey(0)
    k1, k2, k3, k4, k5, k6 = jax.random.split(key, 6)

    # Primary shape consistent with the module's forward: x (N, C, W, L), A (V, W).
    N, C, W, L, V = 2, 4, 16, 16, 16
    x = jax.random.normal(k1, (N, C, W, L), dtype=jnp.float32)
    A = jax.random.normal(k2, (V, W), dtype=jnp.float32)
    _check("aligned", x, A)

    # Unaligned dims (not multiples of 8/128): exercises the column-pad path
    # and full-extent (non-padded) V/W blocks.
    x2 = jax.random.normal(k3, (2, 3, 10, 13), dtype=jnp.float32)
    A2 = jax.random.normal(k4, (7, 10), dtype=jnp.float32)
    _check("unaligned", x2, A2)

    # Larger case: multi-step "parallel" column grid with A resident in VMEM.
    x3 = jax.random.normal(k5, (4, 8, 32, 64), dtype=jnp.float32)
    A3 = jax.random.normal(k6, (32, 32), dtype=jnp.float32)
    _check("multi_tile", x3, A3)

    print("KERNEL_OK")
</pallas_src>

<mosaic_0001>
module attributes {stable_mosaic.version = 11 : i64} {
  func.func @_nconv_matmul_kernel(%arg0: i32, %arg1: memref<16x16xf32, #tpu.memory_space<vmem>>, %arg2: memref<16x128xf32, #tpu.memory_space<vmem>>, %arg3: memref<16x128xf32, #tpu.memory_space<vmem>>) attributes {dimension_semantics = [#tpu.dimension_semantics<parallel>], iteration_bounds = array<i64: 1>, scalar_prefetch = 0 : i64, scratch_operands = 0 : i64, tpu.core_type = #tpu.core_type<tc>, window_params = [{pipeline_mode = #tpu.pipeline_mode<synchronous>, transform_indices = @transform_0, window_bounds = array<i64: 16, 16>}, {transform_indices = @transform_1, window_bounds = array<i64: 16, 128>}, {transform_indices = @transform_2, window_bounds = array<i64: 16, 128>}]} {
    %c0 = arith.constant 0 : index
    %c0_0 = arith.constant 0 : index
    %0 = vector.load %arg1[%c0, %c0_0] : memref<16x16xf32, #tpu.memory_space<vmem>>, vector<16x16xf32>
    %c0_1 = arith.constant 0 : index
    %c0_2 = arith.constant 0 : index
    %1 = vector.load %arg2[%c0_1, %c0_2] : memref<16x128xf32, #tpu.memory_space<vmem>>, vector<16x128xf32>
    %cst = arith.constant dense<0.000000e+00> : vector<16x128xf32>
    %2 = tpu.matmul %0, %1, %cst {dimension_numbers = #tpu.dot_dimension_numbers<[1], [0], [0], [1], [0, 0, 1, 1], [], []>} : vector<16x16xf32>, vector<16x128xf32>, vector<16x128xf32> -> vector<16x128xf32>
    %c0_3 = arith.constant 0 : index
    %c0_4 = arith.constant 0 : index
    %3 = vector.load %arg3[%c0_3, %c0_4] : memref<16x128xf32, #tpu.memory_space<vmem>>, vector<16x128xf32>
    tpu.vector_store %arg3[%c0_3, %c0_4], %2 {strides = array<i32>} : memref<16x128xf32, #tpu.memory_space<vmem>>, vector<16x128xf32>,
    return
  }
  func.func @transform_0(%arg0: i32) -> (i32, i32) {
    %c0_i32 = arith.constant 0 : i32
    %c0_i32_0 = arith.constant 0 : i32
    %c0_i32_1 = arith.constant 0 : i32
    return %c0_i32, %c0_i32_0 : i32, i32
  }
  func.func @transform_1(%arg0: i32) -> (i32, i32) {
    %c0_i32 = arith.constant 0 : i32
    %c0_i32_0 = arith.constant 0 : i32
    return %c0_i32, %arg0 : i32, i32
  }
  func.func @transform_2(%arg0: i32) -> (i32, i32) {
    %c0_i32 = arith.constant 0 : i32
    %c0_i32_0 = arith.constant 0 : i32
    return %c0_i32, %arg0 : i32, i32
  }
}

</mosaic_0001>

<llo_original>
// kernel: tpu_custom_call.1
$region0: #{tpu_custom_call.1}
  #allocation0 [shape = 'u32[]', space=smem, size = 0x4, offset = 0x4, fixed_abs, tag = 'smem constant byte address 0x4 - core index']
  #allocation1 [shape = 'u32[144,128]{1,0:T(1,128)}', space=vmem, size = 0x12000, scoped, tag = 'internal scratch']
  %s0 = inlined_call_operand.hbm [shape: f32[16,16], index: 0, kind: input, shape index: {}]
  %s1 = inlined_call_operand.hbm [shape: f32[16,128], index: 1, kind: input, shape index: {}]
  %s2 = inlined_call_operand.hbm [shape: f32[16,128], index: 2, kind: output, shape index: {}]
  %s3 = sld [smem:[#allocation0]]
  $region26: #{tpu_custom_call.1} parent=0
    _
  %s5 = ssub.s32 1, %s3
  %s6 = scalar_select 0, %s5, %s3
  $region1: #{tpu_custom_call.1} parent=0
    #allocation2 [shape = 'u8[8192]{0}', space=vmem, size = 0x2000, scoped, tag = 'input window, operand 0, single buffered']
    #allocation3 [shape = 's32[1]{0}', space=sflag, size = 0x4, scoped, tag = 'scoped memory for tpu_custom_call.1']
    #allocation4 [shape = 's32[1]{0}', space=sflag, size = 0x4, scoped, tag = 'scoped memory for tpu_custom_call.1']
    #allocation5 [shape = 'u8[8192]{0}', space=vmem, size = 0x2000, scoped, tag = 'input window, operand 1, single buffered']
    #allocation6 [shape = 's32[1]{0}', space=sflag, size = 0x4, scoped, tag = 'scoped memory for tpu_custom_call.1']
    #allocation7 [shape = 'u8[8192]{0}', space=vmem, size = 0x2000, scoped, tag = 'output window, operand 0, single buffered']
    %7 = vsyncpa [#allocation3], 0
    %8 = vsyncpa [#allocation6], 0
    %9 = vsyncpa [#allocation4], 0
    // Predicated region
    $region2: #{tpu_custom_call.1} parent=1 // pred_check
      _
    $region3: #{tpu_custom_call.1} parent=1 // pred_check_branch
      %11 = sbr.rel (0) target = $region5
    $region4: #{tpu_custom_call.1} parent=1 // pred_region
      %s13 = ssub.s32 256, 256
      %14 = vsyncadd [#allocation3], %s13
      %s15 = sshll.u32 [#allocation2], 4
      %s16 = int_to_ptr.vmem [resolvable:$true] %s15
      %21 = dma.hbm_to_vmem [thread:$0]  %s0, 256, %s16, [#allocation3], 128, 128, 8
    $region5: #{tpu_custom_call.1} parent=1 // pred_fallthru
      _
    // Predicated region
    $region6: #{tpu_custom_call.1} parent=1 // pred_check
      _
    $region7: #{tpu_custom_call.1} parent=1 // pred_check_branch
      %23 = sbr.rel (0) target = $region9
    $region8: #{tpu_custom_call.1} parent=1 // pred_region
      %s25 = ssub.s32 256, 256
      %26 = vsyncadd [#allocation6], %s25
      %s27 = sshll.u32 [#allocation5], 4
      %s28 = int_to_ptr.vmem [resolvable:$true] %s27
      %33 = dma.hbm_to_vmem [thread:$0]  %s1, 256, %s28, [#allocation6], 128, 128, 8
    $region9: #{tpu_custom_call.1} parent=1 // pred_fallthru
      _
    // Predicated region
    $region10: #{tpu_custom_call.1} parent=1 // pred_check
      _
    $region11: #{tpu_custom_call.1} parent=1 // pred_check_branch
      %35 = sbr.rel (0) target = $region13
    $region12: #{tpu_custom_call.1} parent=1 // pred_region
      %36 = dma.done [#allocation3], 256
    $region13: #{tpu_custom_call.1} parent=1 // pred_fallthru
      _
    // Predicated region
    $region14: #{tpu_custom_call.1} parent=1 // pred_check
      _
    $region15: #{tpu_custom_call.1} parent=1 // pred_check_branch
      %38 = sbr.rel (0) target = $region17
    $region16: #{tpu_custom_call.1} parent=1 // pred_region
      %39 = dma.done [#allocation6], 256
    $region17: #{tpu_custom_call.1} parent=1 // pred_fallthru
      _
    %v40 = vld [vmem:[#allocation2] sm:$0xff]
    %v41 = vld [vmem:[#allocation2 + $0x8] sm:$0xff]
    %v42 = vld [vmem:[#allocation5] sm:$0xff]
    %v43 = vld [vmem:[#allocation5 + $0x8] sm:$0xff]
    %vm44 = vcmask 130048
    %v46 = vsel %vm44, %v40, 0
    %v49 = vsel %vm44, %v41, 0
    %51 = vmatprep.subr.mxu0 0.0
    %52 = vmatpush1.msra.mxu0 %v42
    %53 = vmatprep.subr.mxu0 0.0
    %54 = vmatpush1.msra.mxu0 %v43
    %55 = vmatprep.subr.mxu0 0.0
    %56 = vmatpush1.msra.mxu0 0.0
    %57 = vmatprep.subr.mxu0 0.0
    %58 = vmatpush1.msra.mxu0 0.0
    %59 = vmatprep.subr.mxu0 0.0
    %60 = vmatpush1.msra.mxu0 0.0
    %61 = vmatprep.subr.mxu0 0.0
    %62 = vmatpush1.msra.mxu0 0.0
    %63 = vmatprep.subr.mxu0 0.0
    %64 = vmatpush1.msra.mxu0 0.0
    %65 = vmatprep.subr.mxu0 0.0
    %66 = vmatpush1.msra.mxu0 0.0
    %67 = vmatprep.subr.mxu0 0.0
    %68 = vmatpush1.msra.mxu0 0.0
    %69 = vmatprep.subr.mxu0 0.0
    %70 = vmatpush1.msra.mxu0 0.0
    %71 = vmatprep.subr.mxu0 0.0
    %72 = vmatpush1.msra.mxu0 0.0
    %73 = vmatprep.subr.mxu0 0.0
    %74 = vmatpush1.msra.mxu0 0.0
    %75 = vmatprep.subr.mxu0 0.0
    %76 = vmatpush1.msra.mxu0 0.0
    %77 = vmatprep.subr.mxu0 0.0
    %78 = vmatpush1.msra.mxu0 0.0
    %79 = vmatprep.subr.mxu0 0.0
    %80 = vmatpush1.msra.mxu0 0.0
    %81 = vmatprep.subr.mxu0 0.0
    %82 = vmatpush1.msra.mxu0 0.0
    %83 = vmatprep.subr.mxu0 0.0
    %84 = vmatpush1.msra.mxu0 0.0
    %85 = vmatprep.subr.mxu0 0.0
    %86 = vmatpush1.msra.mxu0 0.0
    %87 = vmatprep.subr.mxu0 0.0
    %88 = vmatpush1.msra.mxu0 0.0
    %89 = vmatprep.subr.mxu0 0.0
    %90 = vmatpush1.msra.mxu0 0.0
    %91 = vmatprep.subr.mxu0 0.0
    %92 = vmatpush1.msra.mxu0 0.0
    %93 = vmatprep.subr.mxu0 0.0
    %94 = vmatpush1.msra.mxu0 0.0
    %95 = vmatprep.subr.mxu0 0.0
    %96 = vmatpush1.msra.mxu0 0.0
    %97 = vmatprep.subr.mxu0 0.0
    %98 = vmatpush1.msra.mxu0 0.0
    %99 = vmatprep.subr.mxu0 0.0
    %100 = vmatpush1.msra.mxu0 0.0
    %101 = vmatprep.subr.mxu0 0.0
    %102 = vmatpush1.msra.mxu0 0.0
    %103 = vmatprep.subr.mxu0 0.0
    %104 = vmatpush1.msra.mxu0 0.0
    %105 = vmatprep.subr.mxu0 0.0
    %106 = vmatpush1.msra.mxu0 0.0
    %107 = vmatprep.subr.mxu0 0.0
    %108 = vmatpush1.msra.mxu0 0.0
    %109 = vmatprep.subr.mxu0 0.0
    %110 = vmatpush1.msra.mxu0 0.0
    %111 = vmatprep.subr.mxu0 0.0
    %112 = vmatpush1.msra.mxu0 0.0
    %113 = vmatprep.subr.mxu0 0.0
    %114 = vmatpush1.msra.mxu0 0.0
    %115 = vmatprep.mubr.f32.mxu0 0.0
    %116 = vmatmul.mubr.f32.gmra.mrb[0].mxu0 %v46
    %v117 = vpop.f32.mrb[0].mxu0
    %v118 = vadd.f32 0.0, %v117
    %v119 = vpop.f32.mrb[0].mxu0
    %120 = vmatprep.mubr.f32.mxu0 0.0
    %121 = vmatmul.mubr.f32.gmra.mrb[0].mxu0 %v49
    %v122 = vpop.f32.mrb[0].mxu0
    %v123 = vadd.f32 0.0, %v122
    %v124 = vpop.f32.mrb[0].mxu0
    %125 = vdwg.mxu0
    %126 = vst [vmem:[#allocation7] sm:$0xff] %v118
    %127 = vst [vmem:[#allocation7 + $0x8] sm:$0xff] %v123
    // Predicated region
    $region18: #{tpu_custom_call.1} parent=1 // pred_check
      _
    $region19: #{tpu_custom_call.1} parent=1 // pred_check_branch
      %129 = sbr.rel (0) target = $region21
    $region20: #{tpu_custom_call.1} parent=1 // pred_region
      %s131 = ssub.s32 256, 256
      %132 = vsyncadd [#allocation4], %s131
      %s133 = sshll.u32 [#allocation7], 4
      %s134 = int_to_ptr.vmem [resolvable:$true] %s133
      %139 = dma.vmem_to_hbm [thread:$0]  %s134, 256, %s2, [#allocation4], 128, 128, 8
    $region21: #{tpu_custom_call.1} parent=1 // pred_fallthru
      _
    // Predicated region
    $region22: #{tpu_custom_call.1} parent=1 // pred_check
      _
    $region23: #{tpu_custom_call.1} parent=1 // pred_check_branch
      %141 = sbr.rel (0) target = $region25
    $region24: #{tpu_custom_call.1} parent=1 // pred_region
      %142 = dma.done [#allocation4], 256
    $region25: #{tpu_custom_call.1} parent=1 // pred_fallthru
      _
    %143 = vsyncpa [#allocation3], 1
    %144 = vsyncpa [#allocation6], 1
    %145 = vsyncpa [#allocation4], 1

</llo_original>
